<compile_context>
chip_gen: v7x
topology: tpu7x:2x2x1
jax: 0.10.0
libtpu: 0.0.40
codegen_flags: <defaults>
</compile_context>

<pallas_src>
import functools

import jax
import jax.numpy as jnp
from jax.experimental import pallas as pl
from jax.experimental.pallas import tpu as pltpu

N_QUBITS = 1
N_FEATURES = 16
HIDDEN = 128
LANES = 128
BATCH = 8


def _quantum_vae_kernel(x_ref, w1_ref, b1_ref, w2_ref, b2_ref, out_ref,
                        *, n_features):
    ang = x_ref[...]                                        # (TM, 2) f32
    # --- Quantum encoder: <Z> after RX(x0) RY(x1) RZ(.) == cos(x0)*cos(x1)
    lat = jnp.cos(ang[:, 0:1]) * jnp.cos(ang[:, 1:2])       # (TM, 1)
    # --- Classical decoder
    # fc1: Linear(1, 128): outer product on the VPU + ReLU
    h = jnp.maximum(lat * w1_ref[...] + b1_ref[...], 0.0)   # (TM, 128)
    # fc2: Linear(128, n_features) done as a lane-dense (TM,128)@(128,128)
    # MXU matmul against zero-padded weights; +b2 fused on the f32 result.
    rec = jnp.dot(h, w2_ref[...],
                  preferred_element_type=jnp.float32) + b2_ref[...]  # (TM, 128)
    # Pack latent into lane `n_features` of the same lane-dense output slab
    # (padded lanes of rec are zero, so this is lossless).
    lane = jax.lax.broadcasted_iota(jnp.int32, rec.shape, 1)
    out_ref[...] = jnp.where(lane == n_features, lat, rec)


def quantum_vae_forward(x, w1_t, b1, w2_t, b2, *, tm=256):
    """x: (B, F); w1_t: (1, 128); b1: (1, 128); w2_t: (128, F); b2: (1, F).

    Returns (latent (B, 1), reconstructed_x (B, F)).
    """
    B, F = x.shape
    H = w1_t.shape[1]
    assert F + 1 <= LANES, "need one spare lane for the latent"

    # Batch tile: multiple of 8 sublanes, capped at `tm`; pad batch to fit.
    tile = min(int(tm), max(8, B))
    tile = -(-tile // 8) * 8
    b_pad = -(-B // tile) * tile

    # Only the two angle columns are ever read by the circuit.
    x_ang = x[:, :2]
    if b_pad != B:
        x_ang = jnp.pad(x_ang, ((0, b_pad - B), (0, 0)))

    # Zero-pad fc2 to lane width 128 so matmul + output store are lane-dense.
    w2_p = jnp.pad(w2_t, ((0, 0), (0, LANES - F)))
    b2_p = jnp.pad(b2, ((0, 0), (0, LANES - F)))

    grid = (b_pad // tile,)
    resident = lambda shp: pl.BlockSpec(shp, lambda i: (0,) * len(shp))

    cost = pl.CostEstimate(
        flops=2 * b_pad * H * LANES + 3 * b_pad * H,
        transcendentals=2 * b_pad,
        bytes_accessed=4 * (x_ang.size + w1_t.size + b1.size
                            + w2_p.size + b2_p.size + b_pad * LANES),
    )

    out = pl.pallas_call(
        functools.partial(_quantum_vae_kernel, n_features=F),
        out_shape=jax.ShapeDtypeStruct((b_pad, LANES), jnp.float32),
        grid=grid,
        in_specs=[
            pl.BlockSpec((tile, 2), lambda i: (i, 0)),      # x angles, tiled
            resident(w1_t.shape),                           # (1, 128)
            resident(b1.shape),                             # (1, 128)
            resident(w2_p.shape),                           # (128, 128)
            resident(b2_p.shape),                           # (1, 128)
        ],
        out_specs=pl.BlockSpec((tile, LANES), lambda i: (i, 0)),
        compiler_params=pltpu.CompilerParams(
            dimension_semantics=("parallel",),
        ),
        cost_estimate=cost,
    )(x_ang, w1_t, b1, w2_p, b2_p)

    latent = out[:B, F:F + 1]
    reconstructed_x = out[:B, :F]
    return latent, reconstructed_x


def _reference(x, w1_t, b1, w2_t, b2):
    lat = jnp.cos(x[:, 0:1]) * jnp.cos(x[:, 1:2])
    h = jnp.maximum(lat * w1_t + b1, 0.0)
    return lat, h @ w2_t + b2


if __name__ == "__main__":
    key = jax.random.PRNGKey(0)
    k_x, k_w1, k_b1, k_w2, k_b2 = jax.random.split(key, 5)

    # Example input: batch of samples with n_features each (circuit uses x[0], x[1]).
    x = jax.random.normal(k_x, (BATCH, N_FEATURES), dtype=jnp.float32)

    # Deterministic parameter init (shapes from ClassicalDecoder.__init__).
    # fc1.weight: (128, 1)  -> stored transposed as (1, 128)
    # fc1.bias:   (128,)    -> stored as (1, 128)
    # fc2.weight: (F, 128)  -> stored transposed as (128, F)
    # fc2.bias:   (F,)      -> stored as (1, F)
    w1_t = jax.random.normal(k_w1, (1, HIDDEN), dtype=jnp.float32)
    b1 = jax.random.normal(k_b1, (1, HIDDEN), dtype=jnp.float32) * 0.1
    w2_t = jax.random.normal(k_w2, (HIDDEN, N_FEATURES),
                             dtype=jnp.float32) * (1.0 / jnp.sqrt(HIDDEN))
    b2 = jax.random.normal(k_b2, (1, N_FEATURES), dtype=jnp.float32) * 0.1

    latent, recon = quantum_vae_forward(x, w1_t, b1, w2_t, b2)
    jax.block_until_ready((latent, recon))

    lat_ref, rec_ref = _reference(x, w1_t, b1, w2_t, b2)
    assert latent.shape == (BATCH, 1)
    assert recon.shape == (BATCH, N_FEATURES)
    assert jnp.allclose(latent, lat_ref, atol=1e-5, rtol=1e-5)
    assert jnp.allclose(recon, rec_ref, atol=1e-4, rtol=1e-4)

    print("KERNEL_OK")
</pallas_src>

<mosaic_0001>
module attributes {stable_mosaic.version = 11 : i64} {
  func.func @_quantum_vae_kernel(%arg0: i32, %arg1: memref<8x2xf32, #tpu.memory_space<vmem>>, %arg2: memref<1x128xf32, #tpu.memory_space<vmem>>, %arg3: memref<1x128xf32, #tpu.memory_space<vmem>>, %arg4: memref<128x128xf32, #tpu.memory_space<vmem>>, %arg5: memref<1x128xf32, #tpu.memory_space<vmem>>, %arg6: memref<8x128xf32, #tpu.memory_space<vmem>>) attributes {dimension_semantics = [#tpu.dimension_semantics<parallel>], iteration_bounds = array<i64: 1>, scalar_prefetch = 0 : i64, scratch_operands = 0 : i64, tpu.core_type = #tpu.core_type<tc>, window_params = [{transform_indices = @transform_0, window_bounds = array<i64: 8, 2>}, {pipeline_mode = #tpu.pipeline_mode<synchronous>, transform_indices = @transform_1, window_bounds = array<i64: 1, 128>}, {pipeline_mode = #tpu.pipeline_mode<synchronous>, transform_indices = @transform_2, window_bounds = array<i64: 1, 128>}, {pipeline_mode = #tpu.pipeline_mode<synchronous>, transform_indices = @transform_3, window_bounds = array<i64: 128, 128>}, {pipeline_mode = #tpu.pipeline_mode<synchronous>, transform_indices = @transform_4, window_bounds = array<i64: 1, 128>}, {transform_indices = @transform_5, window_bounds = array<i64: 8, 128>}]} {
    %c0 = arith.constant 0 : index
    %c0_0 = arith.constant 0 : index
    %0 = vector.load %arg1[%c0, %c0_0] : memref<8x2xf32, #tpu.memory_space<vmem>>, vector<8x2xf32>
    %1 = vector.extract_strided_slice %0 {offsets = [0, 0], sizes = [8, 1], strides = [1, 1]} : vector<8x2xf32> to vector<8x1xf32>
    %2 = math.cos %1 : vector<8x1xf32>
    %3 = vector.extract_strided_slice %0 {offsets = [0, 1], sizes = [8, 1], strides = [1, 1]} : vector<8x2xf32> to vector<8x1xf32>
    %4 = math.cos %3 : vector<8x1xf32>
    %5 = arith.mulf %2, %4 : vector<8x1xf32>
    %c0_1 = arith.constant 0 : index
    %c0_2 = arith.constant 0 : index
    %6 = vector.load %arg2[%c0_1, %c0_2] : memref<1x128xf32, #tpu.memory_space<vmem>>, vector<1x128xf32>
    %7 = vector.broadcast %5 : vector<8x1xf32> to vector<8x128xf32>
    %8 = vector.broadcast %6 : vector<1x128xf32> to vector<8x128xf32>
    %9 = arith.mulf %7, %8 : vector<8x128xf32>
    %c0_3 = arith.constant 0 : index
    %c0_4 = arith.constant 0 : index
    %10 = vector.load %arg3[%c0_3, %c0_4] : memref<1x128xf32, #tpu.memory_space<vmem>>, vector<1x128xf32>
    %11 = vector.broadcast %10 : vector<1x128xf32> to vector<8x128xf32>
    %12 = arith.addf %9, %11 : vector<8x128xf32>
    %cst = arith.constant 0.000000e+00 : f32
    %13 = vector.broadcast %cst : f32 to vector<8x128xf32>
    %14 = arith.maximumf %12, %13 : vector<8x128xf32>
    %c0_5 = arith.constant 0 : index
    %c0_6 = arith.constant 0 : index
    %15 = vector.load %arg4[%c0_5, %c0_6] : memref<128x128xf32, #tpu.memory_space<vmem>>, vector<128x128xf32>
    %cst_7 = arith.constant dense<0.000000e+00> : vector<8x128xf32>
    %16 = tpu.matmul %14, %15, %cst_7 {dimension_numbers = #tpu.dot_dimension_numbers<[1], [0], [0], [1], [0, 0, 1, 1], [], []>} : vector<8x128xf32>, vector<128x128xf32>, vector<8x128xf32> -> vector<8x128xf32>
    %c0_8 = arith.constant 0 : index
    %c0_9 = arith.constant 0 : index
    %17 = vector.load %arg5[%c0_8, %c0_9] : memref<1x128xf32, #tpu.memory_space<vmem>>, vector<1x128xf32>
    %18 = vector.broadcast %17 : vector<1x128xf32> to vector<8x128xf32>
    %19 = arith.addf %16, %18 : vector<8x128xf32>
    %20 = tpu.iota {dimensions = array<i32: 1>} : vector<8x128xi32>
    %c16_i32 = arith.constant 16 : i32
    %21 = vector.broadcast %c16_i32 : i32 to vector<8x128xi32>
    %22 = arith.cmpi eq, %20, %21 : vector<8x128xi32>
    %23 = vector.shape_cast %5 : vector<8x1xf32> to vector<8x1xf32>
    %24 = vector.broadcast %23 : vector<8x1xf32> to vector<8x128xf32>
    %25 = arith.select %22, %24, %19 : vector<8x128xi1>, vector<8x128xf32>
    %c0_10 = arith.constant 0 : index
    %c0_11 = arith.constant 0 : index
    %26 = vector.load %arg6[%c0_10, %c0_11] : memref<8x128xf32, #tpu.memory_space<vmem>>, vector<8x128xf32>
    tpu.vector_store %arg6[%c0_10, %c0_11], %25 {strides = array<i32>} : memref<8x128xf32, #tpu.memory_space<vmem>>, vector<8x128xf32>,
    return
  }
  func.func @transform_0(%arg0: i32) -> (i32, i32) {
    %c0_i32 = arith.constant 0 : i32
    %c0_i32_0 = arith.constant 0 : i32
    return %arg0, %c0_i32 : i32, i32
  }
  func.func @transform_1(%arg0: i32) -> (i32, i32) {
    %c0_i32 = arith.constant 0 : i32
    %c0_i32_0 = arith.constant 0 : i32
    %c0_i32_1 = arith.constant 0 : i32
    return %c0_i32, %c0_i32_0 : i32, i32
  }
  func.func @transform_2(%arg0: i32) -> (i32, i32) {
    %c0_i32 = arith.constant 0 : i32
    %c0_i32_0 = arith.constant 0 : i32
    %c0_i32_1 = arith.constant 0 : i32
    return %c0_i32, %c0_i32_0 : i32, i32
  }
  func.func @transform_3(%arg0: i32) -> (i32, i32) {
    %c0_i32 = arith.constant 0 : i32
    %c0_i32_0 = arith.constant 0 : i32
    %c0_i32_1 = arith.constant 0 : i32
    return %c0_i32, %c0_i32_0 : i32, i32
  }
  func.func @transform_4(%arg0: i32) -> (i32, i32) {
    %c0_i32 = arith.constant 0 : i32
    %c0_i32_0 = arith.constant 0 : i32
    %c0_i32_1 = arith.constant 0 : i32
    return %c0_i32, %c0_i32_0 : i32, i32
  }
  func.func @transform_5(%arg0: i32) -> (i32, i32) {
    %c0_i32 = arith.constant 0 : i32
    %c0_i32_0 = arith.constant 0 : i32
    return %arg0, %c0_i32 : i32, i32
  }
}

</mosaic_0001>

<llo_original>
// kernel: tpu_custom_call.1
$region0: #{tpu_custom_call.1}
  #allocation0 [shape = 'u32[]', space=smem, size = 0x4, offset = 0x4, fixed_abs, tag = 'smem constant byte address 0x4 - core index']
  #allocation1 [shape = 'u32[144,128]{1,0:T(1,128)}', space=vmem, size = 0x12000, scoped, tag = 'internal scratch']
  %s0 = inlined_call_operand.vmem [shape: f32[8,2], index: 0, kind: input, shape index: {}]
  %s1 = inlined_call_operand.vmem [shape: f32[1,128], index: 1, kind: input, shape index: {}]
  %s2 = inlined_call_operand.vmem [shape: f32[1,128], index: 2, kind: input, shape index: {}]
  %s3 = inlined_call_operand.hbm [shape: f32[128,128], index: 3, kind: input, shape index: {}]
  %s4 = inlined_call_operand.vmem [shape: f32[1,128], index: 4, kind: input, shape index: {}]
  %s5 = inlined_call_operand.hbm [shape: f32[8,128], index: 5, kind: output, shape index: {}]
  %s6 = sld [smem:[#allocation0]]
  $region34: #{tpu_custom_call.1} parent=0
    _
  %s8 = ssub.s32 1, %s6
  %s9 = scalar_select 0, %s8, %s6
  $region1: #{tpu_custom_call.1} parent=0
    #allocation2 [shape = 'u8[65536]{0}', space=vmem, size = 0x10000, scoped, tag = 'input window, operand 3, single buffered']
    #allocation3 [shape = 's32[1]{0}', space=sflag, size = 0x4, scoped, tag = 'scoped memory for tpu_custom_call.1']
    #allocation4 [shape = 's32[1]{0}', space=sflag, size = 0x4, scoped, tag = 'scoped memory for tpu_custom_call.1']
    #allocation5 [shape = 'u8[4096]{0}', space=vmem, size = 0x1000, scoped, tag = 'output window, operand 0, single buffered']
    %10 = vsyncpa [#allocation3], 0
    %11 = vsyncpa [#allocation4], 0
    // Predicated region
    $region2: #{tpu_custom_call.1} parent=1 // pred_check
      _
    $region3: #{tpu_custom_call.1} parent=1 // pred_check_branch
      %13 = sbr.rel (0) target = $region5
    $region4: #{tpu_custom_call.1} parent=1 // pred_region
      _
    $region5: #{tpu_custom_call.1} parent=1 // pred_fallthru
      _
    // Predicated region
    $region6: #{tpu_custom_call.1} parent=1 // pred_check
      _
    $region7: #{tpu_custom_call.1} parent=1 // pred_check_branch
      %15 = sbr.rel (0) target = $region9
    $region8: #{tpu_custom_call.1} parent=1 // pred_region
      _
    $region9: #{tpu_custom_call.1} parent=1 // pred_fallthru
      _
    // Predicated region
    $region10: #{tpu_custom_call.1} parent=1 // pred_check
      _
    $region11: #{tpu_custom_call.1} parent=1 // pred_check_branch
      %17 = sbr.rel (0) target = $region13
    $region12: #{tpu_custom_call.1} parent=1 // pred_region
      _
    $region13: #{tpu_custom_call.1} parent=1 // pred_fallthru
      _
    // Predicated region
    $region14: #{tpu_custom_call.1} parent=1 // pred_check
      _
    $region15: #{tpu_custom_call.1} parent=1 // pred_check_branch
      %19 = sbr.rel (0) target = $region17
    $region16: #{tpu_custom_call.1} parent=1 // pred_region
      %s21 = ssub.s32 2048, 2048
      %22 = vsyncadd [#allocation3], %s21
      %s23 = sshll.u32 [#allocation2], 4
      %s24 = int_to_ptr.vmem [resolvable:$true] %s23
      %29 = dma.hbm_to_vmem [thread:$0]  %s3, 2048, %s24, [#allocation3], 128, 128, 8
    $region17: #{tpu_custom_call.1} parent=1 // pred_fallthru
      _
    // Predicated region
    $region18: #{tpu_custom_call.1} parent=1 // pred_check
      _
    $region19: #{tpu_custom_call.1} parent=1 // pred_check_branch
      %31 = sbr.rel (0) target = $region21
    $region20: #{tpu_custom_call.1} parent=1 // pred_region
      _
    $region21: #{tpu_custom_call.1} parent=1 // pred_fallthru
      _
    // Predicated region
    $region22: #{tpu_custom_call.1} parent=1 // pred_check
      _
    $region23: #{tpu_custom_call.1} parent=1 // pred_check_branch
      %33 = sbr.rel (0) target = $region25
    $region24: #{tpu_custom_call.1} parent=1 // pred_region
      %34 = dma.done [#allocation3], 2048
    $region25: #{tpu_custom_call.1} parent=1 // pred_fallthru
      _
    %v35 = vld [vmem:[%s0] sm:$0xff]
    %v36 = vand.u32 2147483647, %v35
    %vm37 = vcmp.le.f32.partialorder %v36, 0.7853982
    %vm38 = vcmp.lt.s32.totalorder %v35, 0
    %v39 = vand.u32 %v35, 2139095040
    %v40 = vshrl.u32 %v39, 23
    %v41 = vsub.s32 %v40, 127
    %v42 = vand.u32 2147483647, %v35
    %v43 = vand.u32 %v42, 8388607
    %v44 = vor.u32 %v43, 8388608
    %v45 = vsub.s32 0, %v44
    %v46 = vadd.s32 %v41, 1
    %vm47 = vcmp.gt.s32.totalorder %v46, 0
    %v48 = vsel %vm47, %v46, 0
    %v49 = vshrl.u32 %v48, 5
    %v50 = vand.u32 %v48, 31
    %v51 = vsub.s32 32, %v50
    %v52 = vshrl.u32 683565275, %v51
    %v53 = vshll.u32 683565275, %v50
    %v54 = vshrl.u32 2475754826, %v51
    %v55 = vor.u32 %v53, %v54
    %v56 = vshll.u32 2475754826, %v50
    %v57 = vshrl.u32 2131351028, %v51
    %v58 = vor.u32 %v56, %v57
    %v59 = vshll.u32 2131351028, %v50
    %v60 = vshrl.u32 2102212464, %v51
    %v61 = vor.u32 %v59, %v60
    %v62 = vshll.u32 2102212464, %v50
    %v63 = vshrl.u32 920167782, %v51
    %v64 = vor.u32 %v62, %v63
    %v65 = vshll.u32 920167782, %v50
    %v66 = vshrl.u32 1326507024, %v51
    %v67 = vor.u32 %v65, %v66
    %vm68 = vcmp.lt.s32.totalorder %v49, 1
    %vm69 = vcmp.lt.s32.totalorder %v49, 2
    %vm70 = vcmp.lt.s32.totalorder %v49, 3
    %vm71 = vcmp.lt.s32.totalorder %v49, 4
    %v72 = vsel %vm68, %v52, %v55
    %v73 = vsel %vm71, %v61, 2102212464
    %v74 = vsel %vm70, %v58, %v73
    %v75 = vsel %vm69, %v72, %v74
    %v76 = vsel %vm68, %v55, %v58
    %v77 = vsel %vm71, %v64, 920167782
    %v78 = vsel %vm70, %v61, %v77
    %v79 = vsel %vm69, %v76, %v78
    %v80 = vsel %vm68, %v58, %v61
    %v81 = vsel %vm71, %v67, 1326507024
    %v82 = vsel %vm70, %v64, %v81
    %v83 = vsel %vm69, %v80, %v82
    %v84 = vshll.u32 %v44, 8
    %v85 = vmul.u32.u64.compose %v84, %v83
    %v86 = vextract.low.u32 %v85
    %v87 = vextract.high.u32 %v85
    %v88 = vmul.u32.u64.compose %v84, %v79
    %v89 = vextract.low.u32 %v88
    %v90 = vextract.high.u32 %v88
    %v91 = vmul.u32 %v84, %v75
    %v92 = vadd.s32 %v87, %v89
    %vm93 = vc.u32 %v87, %v89
    %v94 = vadd.s32 %v90, 1
    %v95 = vsel %vm93, %v94, %v90
    %v96 = vadd.s32 %v91, %v95
    %v97 = vadd.s32 %v96, 536870912
    %v98 = vshrl.u32 %v97, 30
    %v99 = vshll.u32 %v98, 30
    %v100 = vsub.s32 %v96, %v99
    %vm101 = vcmp.lt.s32.totalorder %v100, 0
    %v102 = vsub.s32 0, %v100
    %v103 = vsel %vm101, %v102, %v100
    %v104 = vclz %v103
    %v105 = vsub.s32 %v104, 2
    %vm106 = vcmp.gt.s32.totalorder 0, %v105
    %v107 = vsel %vm106, 0, %v105
    %v108 = vsub.s32 32, %v107
    %v109 = vshll.u32 %v100, %v107
    %v110 = vshrl.u32 %v92, %v108
    %v111 = vor.u32 %v109, %v110
    %v112 = vsub.s32 4294967266, %v107
    %v113 = vadd.s32 %v112, 127
    %v114 = vshll.u32 %v113, 23
    %v115 = vor.u32 4788187, %v114
    %v116 = vand.u32 2147483647, %v115
    %v118 = vcvt.s32.f32 %v111
    %v119 = vmul.f32 %v118, %v116
    %v120 = vxor.u32 %v119, 2147483648
    %v121 = vsel %vm38, %v120, %v119
    %v122 = vsub.s32 4, %v98
    %v123 = vsel %vm38, %v122, %v98
    %v124 = vsel %vm37, %v35, %v121
    %v125 = vsel %vm37, 0, %v123
    %v126 = vcosq.f32.pop %v124
    %v127 = vsinq.f32.pop %v124
    %vm128 = vweird.f32 %v35
    %v129 = vand.u32 %v125, 3
    %vm130 = vcmp.lt.s32.totalorder %v129, 2
    %vm131 = vcmp.eq.s32.totalorder %v129, 0
    %v132 = vxor.u32 %v127, 2147483648
    %v133 = vsel %vm131, %v126, %v132
    %vm134 = vcmp.eq.s32.totalorder %v129, 2
    %v135 = vxor.u32 %v126, 2147483648
    %v136 = vsel %vm134, %v135, %v127
    %v137 = vsel %vm130, %v133, %v136
    %v138 = vsel %vm128, nan, %v137
    %140 = vrot.lane.b32.xlu0 %v138, 127
    %v141 = vpop.permute.xlu0 %140
    %v143 = vmul.f32 %v138, %v141
    %v144 = vld [vmem:[%s1] sm:$0x1]
    %146 = vset.pattern.permute.xlu0 0
    %147 = vperm.xlu0 %146, %v143
    %v148 = vpop.permute.xlu0 %147
    %v151 = vlaneseq
    %v152 = vshrl.u32 %v151, 7
    %v153 = vsub.s32 0, %v152
    %v154 = vrot.slane %v144, %v153
    %v156 = vmul.f32 %v148, %v154
    %v157 = vld [vmem:[%s2] sm:$0x1]
    %v159 = vlaneseq
    %v160 = vshrl.u32 %v159, 7
    %v161 = vsub.s32 0, %v160
    %v162 = vrot.slane %v157, %v161
    %v164 = vadd.f32 %v156, %v162
    %v165 = vmax.f32 %v164, 0.0
    %v166 = vld [vmem:[#allocation2] sm:$0xff]
    %v167 = vld [vmem:[#allocation2 + $0x8] sm:$0xff]
    %v168 = vld [vmem:[#allocation2 + $0x10] sm:$0xff]
    %v169 = vld [vmem:[#allocation2 + $0x18] sm:$0xff]
    %v170 = vld [vmem:[#allocation2 + $0x20] sm:$0xff]
    %v171 = vld [vmem:[#allocation2 + $0x28] sm:$0xff]
    %v172 = vld [vmem:[#allocation2 + $0x30] sm:$0xff]
    %v173 = vld [vmem:[#allocation2 + $0x38] sm:$0xff]
    %v174 = vld [vmem:[#allocation2 + $0x40] sm:$0xff]
    %v175 = vld [vmem:[#allocation2 + $0x48] sm:$0xff]
    %v176 = vld [vmem:[#allocation2 + $0x50] sm:$0xff]
    %v177 = vld [vmem:[#allocation2 + $0x58] sm:$0xff]
    %v178 = vld [vmem:[#allocation2 + $0x60] sm:$0xff]
    %v179 = vld [vmem:[#allocation2 + $0x68] sm:$0xff]
    %v180 = vld [vmem:[#allocation2 + $0x70] sm:$0xff]
    %v181 = vld [vmem:[#allocation2 + $0x78] sm:$0xff]
    %v182 = vld [vmem:[%s4] sm:$0x1]
    %v184 = vlaneseq
    %v185 = vshrl.u32 %v184, 7
    %v186 = vsub.s32 0, %v185
    %v187 = vrot.slane %v182, %v186
    %189 = vmatprep.subr.mxu0 0.0
    %190 = vmatpush1.msra.mxu0 %v166
    %191 = vmatprep.subr.mxu0 0.0
    %192 = vmatpush1.msra.mxu0 %v167
    %193 = vmatprep.subr.mxu0 0.0
    %194 = vmatpush1.msra.mxu0 %v168
    %195 = vmatprep.subr.mxu0 0.0
    %196 = vmatpush1.msra.mxu0 %v169
    %197 = vmatprep.subr.mxu0 0.0
    %198 = vmatpush1.msra.mxu0 %v170
    %199 = vmatprep.subr.mxu0 0.0
    %200 = vmatpush1.msra.mxu0 %v171
    %201 = vmatprep.subr.mxu0 0.0
    %202 = vmatpush1.msra.mxu0 %v172
    %203 = vmatprep.subr.mxu0 0.0
    %204 = vmatpush1.msra.mxu0 %v173
    %205 = vmatprep.subr.mxu0 0.0
    %206 = vmatpush1.msra.mxu0 %v174
    %207 = vmatprep.subr.mxu0 0.0
    %208 = vmatpush1.msra.mxu0 %v175
    %209 = vmatprep.subr.mxu0 0.0
    %210 = vmatpush1.msra.mxu0 %v176
    %211 = vmatprep.subr.mxu0 0.0
    %212 = vmatpush1.msra.mxu0 %v177
    %213 = vmatprep.subr.mxu0 0.0
    %214 = vmatpush1.msra.mxu0 %v178
    %215 = vmatprep.subr.mxu0 0.0
    %216 = vmatpush1.msra.mxu0 %v179
    %217 = vmatprep.subr.mxu0 0.0
    %218 = vmatpush1.msra.mxu0 %v180
    %219 = vmatprep.subr.mxu0 0.0
    %220 = vmatpush1.msra.mxu0 %v181
    %221 = vmatprep.subr.mxu0 0.0
    %222 = vmatpush1.msra.mxu0 0.0
    %223 = vmatprep.subr.mxu0 0.0
    %224 = vmatpush1.msra.mxu0 0.0
    %225 = vmatprep.subr.mxu0 0.0
    %226 = vmatpush1.msra.mxu0 0.0
    %227 = vmatprep.subr.mxu0 0.0
    %228 = vmatpush1.msra.mxu0 0.0
    %229 = vmatprep.subr.mxu0 0.0
    %230 = vmatpush1.msra.mxu0 0.0
    %231 = vmatprep.subr.mxu0 0.0
    %232 = vmatpush1.msra.mxu0 0.0
    %233 = vmatprep.subr.mxu0 0.0
    %234 = vmatpush1.msra.mxu0 0.0
    %235 = vmatprep.subr.mxu0 0.0
    %236 = vmatpush1.msra.mxu0 0.0
    %237 = vmatprep.subr.mxu0 0.0
    %238 = vmatpush1.msra.mxu0 0.0
    %239 = vmatprep.subr.mxu0 0.0
    %240 = vmatpush1.msra.mxu0 0.0
    %241 = vmatprep.subr.mxu0 0.0
    %242 = vmatpush1.msra.mxu0 0.0
    %243 = vmatprep.subr.mxu0 0.0
    %244 = vmatpush1.msra.mxu0 0.0
    %245 = vmatprep.subr.mxu0 0.0
    %246 = vmatpush1.msra.mxu0 0.0
    %247 = vmatprep.subr.mxu0 0.0
    %248 = vmatpush1.msra.mxu0 0.0
    %249 = vmatprep.subr.mxu0 0.0
    %250 = vmatpush1.msra.mxu0 0.0
    %251 = vmatprep.subr.mxu0 0.0
    %252 = vmatpush1.msra.mxu0 0.0
    %253 = vmatprep.mubr.f32.mxu0 0.0
    %254 = vmatmul.mubr.f32.gmra.mrb[0].mxu0 %v165
    %v255 = vpop.f32.mrb[0].mxu0
    %v256 = vadd.f32 %v187, %v255
    %v257 = vpop.f32.mrb[0].mxu0
    %258 = vdwg.mxu0
    %v259 = vlaneseq
    %v260 = vand.u32 %v259, 127
    %vm261 = vcmp.eq.s32.totalorder %v260, 16
    %v262 = vsel %vm261, %v148, %v256
    %263 = vst [vmem:[#allocation5] sm:$0xff] %v262
    // Predicated region
    $region26: #{tpu_custom_call.1} parent=1 // pred_check
      _
    $region27: #{tpu_custom_call.1} parent=1 // pred_check_branch
      %265 = sbr.rel (0) target = $region29
    $region28: #{tpu_custom_call.1} parent=1 // pred_region
      %s267 = ssub.s32 128, 128
      %268 = vsyncadd [#allocation4], %s267
      %s270 = sshll.u32 [#allocation5], 4
      %s271 = int_to_ptr.vmem [resolvable:$true] %s270
      %273 = dma.vmem_to_hbm [thread:$0]  %s271, 128, %s5, [#allocation4]
    $region29: #{tpu_custom_call.1} parent=1 // pred_fallthru
      _
    // Predicated region
    $region30: #{tpu_custom_call.1} parent=1 // pred_check
      _
    $region31: #{tpu_custom_call.1} parent=1 // pred_check_branch
      %275 = sbr.rel (0) target = $region33
    $region32: #{tpu_custom_call.1} parent=1 // pred_region
      %276 = dma.done [#allocation4], 128
    $region33: #{tpu_custom_call.1} parent=1 // pred_fallthru
      _
    %277 = vsyncpa [#allocation3], 1
    %278 = vsyncpa [#allocation4], 1

</llo_original>
